<compile_context>
chip_gen: v5e
topology: v5e:2x2
jax: 0.10.0
libtpu: 0.0.40
codegen_flags: <defaults>
</compile_context>

<pallas_src>
import functools

import jax
import jax.numpy as jnp
from jax import lax
from jax.experimental import pallas as pl
from jax.experimental.pallas import tpu as pltpu


def _round_up(n, m):
    return ((n + m - 1) // m) * m


def _cdiv(a, b):
    return -(-a // b)


def _vp_kernel(x_ref, halo_ref, w1_ref, w2_ref, p_ref, o_ref, *, t_real):
    """One (batch, time-tile) grid step of the fused VariancePredictor forward.

    x_ref:    (1, tile, d_in)   bf16  current time tile
    halo_ref: (1, 1, 4, d_in)   bf16  rows x[start-2], x[start-1], x[start+tile], x[start+tile+1]
    w1_ref:   (3, d_in, d_h)    bf16  conv1 taps (tap order: t-1, t, t+1)
    w2_ref:   (3, d_h, d_h)     bf16  conv2 taps
    p_ref:    (8, d_h)          f32   rows: b1, g1, be1, b2, g2, be2, wl, bl(broadcast)
    o_ref:    (1, 1, 8, tile)   f32   result row, broadcast over the 8 sublanes (time on lanes)
    """
    tile = x_ref.shape[1]
    start = pl.program_id(1) * tile

    xt = x_ref[0]                                     # (tile, d_in)  bf16
    hl = halo_ref[0, 0]                               # (4, d_in)     bf16
    # Rows for global positions [start-2, start+tile+1]; zero outside the real sequence.
    xe = jnp.concatenate([hl[0:2], xt, hl[2:4]], axis=0)          # (tile+4, d_in) bf16

    b1, g1, be1 = p_ref[0:1], p_ref[1:2], p_ref[2:3]
    b2, g2, be2 = p_ref[3:4], p_ref[4:5], p_ref[5:6]
    wl, blv = p_ref[6:7], p_ref[7:8, 0:1]

    def layer_norm(h, g, be, eps=1e-5):
        mu = jnp.mean(h, axis=-1, keepdims=True)
        d = h - mu
        var = jnp.mean(d * d, axis=-1, keepdims=True)
        return d * lax.rsqrt(var + eps) * g + be

    # ---- conv1 (k=3, pad=1) over tile+2 rows (global positions start-1 .. start+tile):
    #      three accumulating bf16 matmuls (one per tap), f32 accumulation.
    h1 = (jnp.dot(xe[0:tile + 2], w1_ref[0], preferred_element_type=jnp.float32)
          + jnp.dot(xe[1:tile + 3], w1_ref[1], preferred_element_type=jnp.float32)
          + jnp.dot(xe[2:tile + 4], w1_ref[2], preferred_element_type=jnp.float32)
          + b1)
    h1 = layer_norm(jnp.maximum(h1, 0.0), g1, be1)
    # TODO(synk): nn.Dropout is identity in eval mode; training-mode RNG dropout not implemented.

    # Zero rows outside the real sequence: emulates conv2's zero padding at the sequence
    # edges and removes contamination from T-padding rows.
    gpos = start - 1 + lax.broadcasted_iota(jnp.int32, (tile + 2, 1), 0)
    h1 = jnp.where((gpos >= 0) & (gpos < t_real), h1, 0.0)

    # Single f32 -> bf16 cast of the conv2 input (before any tap slicing).
    h1b = h1.astype(jnp.bfloat16)                                 # (tile+2, d_h)

    # ---- conv2 (k=3, pad=1) over the tile rows.
    h2 = (jnp.dot(h1b[0:tile], w2_ref[0], preferred_element_type=jnp.float32)
          + jnp.dot(h1b[1:tile + 1], w2_ref[1], preferred_element_type=jnp.float32)
          + jnp.dot(h1b[2:tile + 2], w2_ref[2], preferred_element_type=jnp.float32)
          + b2)
    h2 = layer_norm(jnp.maximum(h2, 0.0), g2, be2)

    # ---- Linear(d_hidden, 1), lane-dense: contract d_hidden, keep time on lanes (f32).
    out = lax.dot_general(wl, h2, (((1,), (1,)), ((), ())),
                          preferred_element_type=jnp.float32) + blv      # (1, tile)
    # Broadcast over the 8 sublanes of the output block -> full, unmasked, lane-dense store.
    o_ref[0, 0] = jnp.broadcast_to(out, (8, tile))


def _choose_tiling(T, B, tile_t):
    """Balance tiles over T (avoid a nearly-empty last tile) and keep B*n_t >= 2 for v7x."""
    n_t = max(1, _cdiv(T, tile_t))
    if B * n_t < 2:
        n_t = max(1, min(2, _cdiv(T, 16)))       # give both v7x TensorCores work when possible
    tile = _round_up(_cdiv(T, n_t), 16)          # multiple of 16: bf16 sublane tiling
    n_t = _cdiv(T, tile)
    return tile, n_t


def variance_predictor(x, mask_bool, params, tile_t=1024):
    """x: (B, T, d_model), mask_bool: (B, T) bool (True => fill 0.0). Returns (B, T) f32.

    tile_t guidance: v5e/v6e (128 MiB VMEM) can use 1024-2048; keep <= 1024 on v7x (64 MiB VMEM).
    """
    B, T, d_model = x.shape
    d_hidden = params["w1"].shape[-1]

    tile, n_t = _choose_tiling(T, B, tile_t)
    t_pad = n_t * tile

    # Activations enter the kernel in bf16: halves x's HBM->VMEM DMA and removes
    # in-kernel casts of wide im2col tensors.  All matmuls still accumulate in f32.
    x_bf = x.astype(jnp.bfloat16)
    x_p = jnp.pad(x_bf, ((0, 0), (0, t_pad - T), (0, 0)))         # (B, t_pad, d_model)

    # Per-tile halo rows x[start-2], x[start-1], x[start+tile], x[start+tile+1]
    # gathered directly (only 4*n_t rows), zeroed outside the real sequence.
    starts = jnp.arange(n_t, dtype=jnp.int32) * tile
    pos = starts[:, None] + jnp.array([-2, -1, tile, tile + 1], dtype=jnp.int32)[None, :]
    valid = (pos >= 0) & (pos < T)                                 # (n_t, 4)
    halo = jnp.take(x_p, jnp.clip(pos, 0, t_pad - 1).reshape(-1), axis=1)
    halo = halo.reshape(B, n_t, 4, d_model)
    halo = jnp.where(valid.reshape(1, n_t, 4, 1), halo, 0).astype(jnp.bfloat16)

    w1_b = params["w1"].astype(jnp.bfloat16)                       # (3, d_model, d_hidden)
    w2_b = params["w2"].astype(jnp.bfloat16)                       # (3, d_hidden, d_hidden)

    # Pack all tiny per-layer params into one (8, d_hidden) array (one DMA).
    packed = jnp.concatenate([
        params["b1"], params["g1"], params["be1"],
        params["b2"], params["g2"], params["be2"],
        params["wl"].reshape(1, d_hidden),
        jnp.broadcast_to(params["bl"].reshape(1, 1), (1, d_hidden)),
    ], axis=0).astype(jnp.float32)

    kernel = functools.partial(_vp_kernel, t_real=T)

    out4 = pl.pallas_call(
        kernel,
        out_shape=jax.ShapeDtypeStruct((B, n_t, 8, tile), jnp.float32),
        grid=(B, n_t),
        in_specs=[
            pl.BlockSpec((1, tile, d_model), lambda b, t: (b, t, 0)),         # x tile (bf16)
            pl.BlockSpec((1, 1, 4, d_model), lambda b, t: (b, t, 0, 0)),      # halo rows (bf16)
            pl.BlockSpec((3, d_model, d_hidden), lambda b, t: (0, 0, 0)),     # conv1 weight
            pl.BlockSpec((3, d_hidden, d_hidden), lambda b, t: (0, 0, 0)),    # conv2 weight
            pl.BlockSpec((8, d_hidden), lambda b, t: (0, 0)),                 # packed small params
        ],
        out_specs=pl.BlockSpec((1, 1, 8, tile), lambda b, t: (b, t, 0, 0)),   # lane-dense output
        compiler_params=pltpu.CompilerParams(
            dimension_semantics=("parallel", "parallel"),
            vmem_limit_bytes=48 * 1024 * 1024,                    # safe on v5e/v6e/v7x
        ),
    )(x_p, halo, w1_b, w2_b, packed)

    out = out4[:, :, 0, :].reshape(B, t_pad)[:, :T]               # drop sublane bcast + T pad
    return jnp.where(mask_bool, 0.0, out)                         # masked_fill(mask, 0.0)


def reference_forward(x, mask_bool, params):
    """Pure-JAX reference mirroring the PyTorch forward (eval mode), using the same
    bf16 matmul-operand casting as the kernel (everything else in f32)."""
    bf = jnp.bfloat16

    def conv3(h, W, b):
        hb = h.astype(bf)
        Wb = W.astype(bf)
        hp = jnp.pad(hb, ((0, 0), (1, 1), (0, 0)))
        y = (jnp.dot(hp[:, :-2], Wb[0], preferred_element_type=jnp.float32)
             + jnp.dot(hp[:, 1:-1], Wb[1], preferred_element_type=jnp.float32)
             + jnp.dot(hp[:, 2:], Wb[2], preferred_element_type=jnp.float32))
        return y + b

    def ln(h, g, be, eps=1e-5):
        mu = jnp.mean(h, axis=-1, keepdims=True)
        var = jnp.mean((h - mu) ** 2, axis=-1, keepdims=True)
        return (h - mu) * lax.rsqrt(var + eps) * g + be

    h = jnp.maximum(conv3(x, params["w1"], params["b1"]), 0.0)
    h = ln(h, params["g1"], params["be1"])
    h = jnp.maximum(conv3(h, params["w2"], params["b2"]), 0.0)
    h = ln(h, params["g2"], params["be2"])
    out = (h @ params["wl"] + params["bl"])[..., 0]
    return jnp.where(mask_bool, 0.0, out)


def make_params(key, d_model, d_hidden):
    ks = jax.random.split(key, 8)
    u = lambda k, shape, s: jax.random.uniform(k, shape, jnp.float32, -s, s)
    # Conv weights stored as (k=3, in, out)  <=>  PyTorch weight.permute(2, 1, 0).
    return {
        "w1": u(ks[0], (3, d_model, d_hidden), 0.1),
        "b1": u(ks[1], (1, d_hidden), 0.1),
        "g1": jnp.ones((1, d_hidden), jnp.float32),
        "be1": jnp.zeros((1, d_hidden), jnp.float32),
        "w2": u(ks[2], (3, d_hidden, d_hidden), 0.1),
        "b2": u(ks[3], (1, d_hidden), 0.1),
        "g2": jnp.ones((1, d_hidden), jnp.float32),
        "be2": jnp.zeros((1, d_hidden), jnp.float32),
        "wl": u(ks[4], (d_hidden, 1), 0.1),
        "bl": u(ks[5], (1, 1), 0.1),
    }


if __name__ == "__main__":
    # Small shapes; T=40 with tile_t=16 exercises the multi-tile, halo, and ragged-T paths
    # (tile=16, n_t=3, t_pad=48 > T).
    B, T, d_model, d_hidden = 2, 40, 32, 32
    key = jax.random.PRNGKey(0)
    k_x, k_m, k_p = jax.random.split(key, 3)

    x = jax.random.normal(k_x, (B, T, d_model), jnp.float32)
    mask = jax.random.bernoulli(k_m, 0.25, (B, T))                # True => fill with 0.0
    params = make_params(k_p, d_model, d_hidden)

    out = variance_predictor(x, mask, params, tile_t=16)
    out = jax.block_until_ready(out)

    ref = reference_forward(x, mask, params)
    assert out.shape == (B, T)
    assert jnp.allclose(out, ref, atol=1e-2, rtol=1e-2), (
        f"mismatch vs reference: max abs err {jnp.max(jnp.abs(out - ref)):.3e}")

    print("KERNEL_OK")
</pallas_src>

<mosaic_0001>
module attributes {stable_mosaic.version = 11 : i64} {
  func.func @_vp_kernel(%arg0: i32, %arg1: i32, %arg2: memref<1x16x32xbf16, #tpu.memory_space<vmem>>, %arg3: memref<1x1x4x32xbf16, #tpu.memory_space<vmem>>, %arg4: memref<3x32x32xbf16, #tpu.memory_space<vmem>>, %arg5: memref<3x32x32xbf16, #tpu.memory_space<vmem>>, %arg6: memref<8x32xf32, #tpu.memory_space<vmem>>, %arg7: memref<1x1x8x16xf32, #tpu.memory_space<vmem>>) attributes {dimension_semantics = [#tpu.dimension_semantics<parallel>, #tpu.dimension_semantics<parallel>], iteration_bounds = array<i64: 2, 3>, scalar_prefetch = 0 : i64, scratch_operands = 0 : i64, tpu.core_type = #tpu.core_type<tc>, window_params = [{transform_indices = @transform_0, window_bounds = array<i64: 1, 16, 32>}, {transform_indices = @transform_1, window_bounds = array<i64: 1, 1, 4, 32>}, {pipeline_mode = #tpu.pipeline_mode<synchronous>, transform_indices = @transform_2, window_bounds = array<i64: 3, 32, 32>}, {pipeline_mode = #tpu.pipeline_mode<synchronous>, transform_indices = @transform_3, window_bounds = array<i64: 3, 32, 32>}, {pipeline_mode = #tpu.pipeline_mode<synchronous>, transform_indices = @transform_4, window_bounds = array<i64: 8, 32>}, {transform_indices = @transform_5, window_bounds = array<i64: 1, 1, 8, 16>}]} {
    %c16_i32 = arith.constant 16 : i32
    %0 = arith.muli %arg1, %c16_i32 : i32
    %c0 = arith.constant 0 : index
    %c0_0 = arith.constant 0 : index
    %c0_1 = arith.constant 0 : index
    %1 = vector.load %arg2[%c0, %c0_0, %c0_1] : memref<1x16x32xbf16, #tpu.memory_space<vmem>>, vector<1x16x32xbf16>
    %2 = vector.shape_cast %1 : vector<1x16x32xbf16> to vector<16x32xbf16>
    %c0_2 = arith.constant 0 : index
    %c0_3 = arith.constant 0 : index
    %c0_4 = arith.constant 0 : index
    %c0_5 = arith.constant 0 : index
    %3 = vector.load %arg3[%c0_2, %c0_3, %c0_4, %c0_5] : memref<1x1x4x32xbf16, #tpu.memory_space<vmem>>, vector<1x1x4x32xbf16>
    %4 = vector.shape_cast %3 : vector<1x1x4x32xbf16> to vector<4x32xbf16>
    %5 = vector.extract_strided_slice %4 {offsets = [0, 0], sizes = [2, 32], strides = [1, 1]} : vector<4x32xbf16> to vector<2x32xbf16>
    %6 = vector.extract_strided_slice %4 {offsets = [2, 0], sizes = [2, 32], strides = [1, 1]} : vector<4x32xbf16> to vector<2x32xbf16>
    %7 = tpu.concatenate %5, %2, %6 in 0 : vector<2x32xbf16>, vector<16x32xbf16>, vector<2x32xbf16> -> vector<20x32xbf16>
    %c0_6 = arith.constant 0 : index
    %c0_7 = arith.constant 0 : index
    %8 = vector.load %arg6[%c0_6, %c0_7] : memref<8x32xf32, #tpu.memory_space<vmem>>, vector<1x32xf32>
    %c1 = arith.constant 1 : index
    %c0_8 = arith.constant 0 : index
    %9 = vector.load %arg6[%c1, %c0_8] : memref<8x32xf32, #tpu.memory_space<vmem>>, vector<1x32xf32>
    %c2 = arith.constant 2 : index
    %c0_9 = arith.constant 0 : index
    %10 = vector.load %arg6[%c2, %c0_9] : memref<8x32xf32, #tpu.memory_space<vmem>>, vector<1x32xf32>
    %c3 = arith.constant 3 : index
    %c0_10 = arith.constant 0 : index
    %11 = vector.load %arg6[%c3, %c0_10] : memref<8x32xf32, #tpu.memory_space<vmem>>, vector<1x32xf32>
    %c4 = arith.constant 4 : index
    %c0_11 = arith.constant 0 : index
    %12 = vector.load %arg6[%c4, %c0_11] : memref<8x32xf32, #tpu.memory_space<vmem>>, vector<1x32xf32>
    %c5 = arith.constant 5 : index
    %c0_12 = arith.constant 0 : index
    %13 = vector.load %arg6[%c5, %c0_12] : memref<8x32xf32, #tpu.memory_space<vmem>>, vector<1x32xf32>
    %c6 = arith.constant 6 : index
    %c0_13 = arith.constant 0 : index
    %14 = vector.load %arg6[%c6, %c0_13] : memref<8x32xf32, #tpu.memory_space<vmem>>, vector<1x32xf32>
    %c7 = arith.constant 7 : index
    %c0_14 = arith.constant 0 : index
    %15 = vector.load %arg6[%c7, %c0_14] : memref<8x32xf32, #tpu.memory_space<vmem>>, vector<1x1xf32>
    %16 = vector.extract_strided_slice %7 {offsets = [0, 0], sizes = [18, 32], strides = [1, 1]} : vector<20x32xbf16> to vector<18x32xbf16>
    %c0_15 = arith.constant 0 : index
    %c0_16 = arith.constant 0 : index
    %c0_17 = arith.constant 0 : index
    %17 = vector.load %arg4[%c0_15, %c0_16, %c0_17] : memref<3x32x32xbf16, #tpu.memory_space<vmem>>, vector<1x32x32xbf16>
    %18 = vector.shape_cast %17 : vector<1x32x32xbf16> to vector<32x32xbf16>
    %cst = arith.constant dense<0.000000e+00> : vector<18x32xf32>
    %19 = tpu.matmul %16, %18, %cst {dimension_numbers = #tpu.dot_dimension_numbers<[1], [0], [0], [1], [0, 0, 1, 1], [], []>} : vector<18x32xbf16>, vector<32x32xbf16>, vector<18x32xf32> -> vector<18x32xf32>
    %20 = vector.extract_strided_slice %7 {offsets = [1, 0], sizes = [18, 32], strides = [1, 1]} : vector<20x32xbf16> to vector<18x32xbf16>
    %c1_18 = arith.constant 1 : index
    %c0_19 = arith.constant 0 : index
    %c0_20 = arith.constant 0 : index
    %21 = vector.load %arg4[%c1_18, %c0_19, %c0_20] : memref<3x32x32xbf16, #tpu.memory_space<vmem>>, vector<1x32x32xbf16>
    %22 = vector.shape_cast %21 : vector<1x32x32xbf16> to vector<32x32xbf16>
    %cst_21 = arith.constant dense<0.000000e+00> : vector<18x32xf32>
    %23 = tpu.matmul %20, %22, %cst_21 {dimension_numbers = #tpu.dot_dimension_numbers<[1], [0], [0], [1], [0, 0, 1, 1], [], []>} : vector<18x32xbf16>, vector<32x32xbf16>, vector<18x32xf32> -> vector<18x32xf32>
    %24 = arith.addf %19, %23 : vector<18x32xf32>
    %25 = vector.extract_strided_slice %7 {offsets = [2, 0], sizes = [18, 32], strides = [1, 1]} : vector<20x32xbf16> to vector<18x32xbf16>
    %c2_22 = arith.constant 2 : index
    %c0_23 = arith.constant 0 : index
    %c0_24 = arith.constant 0 : index
    %26 = vector.load %arg4[%c2_22, %c0_23, %c0_24] : memref<3x32x32xbf16, #tpu.memory_space<vmem>>, vector<1x32x32xbf16>
    %27 = vector.shape_cast %26 : vector<1x32x32xbf16> to vector<32x32xbf16>
    %cst_25 = arith.constant dense<0.000000e+00> : vector<18x32xf32>
    %28 = tpu.matmul %25, %27, %cst_25 {dimension_numbers = #tpu.dot_dimension_numbers<[1], [0], [0], [1], [0, 0, 1, 1], [], []>} : vector<18x32xbf16>, vector<32x32xbf16>, vector<18x32xf32> -> vector<18x32xf32>
    %29 = arith.addf %24, %28 : vector<18x32xf32>
    %30 = vector.broadcast %8 : vector<1x32xf32> to vector<18x32xf32>
    %31 = arith.addf %29, %30 : vector<18x32xf32>
    %cst_26 = arith.constant 0.000000e+00 : f32
    %32 = vector.broadcast %cst_26 : f32 to vector<18x32xf32>
    %33 = arith.maximumf %31, %32 : vector<18x32xf32>
    %cst_27 = arith.constant dense<0.000000e+00> : vector<18xf32>
    %34 = vector.multi_reduction <add>, %33, %cst_27 [1] : vector<18x32xf32> to vector<18xf32>
    %35 = vector.shape_cast %34 : vector<18xf32> to vector<18x1xf32>
    %cst_28 = arith.constant 3.200000e+01 : f32
    %36 = vector.broadcast %cst_28 : f32 to vector<18x1xf32>
    %37 = arith.divf %35, %36 : vector<18x1xf32>
    %38 = vector.broadcast %37 : vector<18x1xf32> to vector<18x32xf32>
    %39 = arith.subf %33, %38 : vector<18x32xf32>
    %40 = arith.mulf %39, %39 : vector<18x32xf32>
    %cst_29 = arith.constant dense<0.000000e+00> : vector<18xf32>
    %41 = vector.multi_reduction <add>, %40, %cst_29 [1] : vector<18x32xf32> to vector<18xf32>
    %42 = vector.shape_cast %41 : vector<18xf32> to vector<18x1xf32>
    %cst_30 = arith.constant 3.200000e+01 : f32
    %43 = vector.broadcast %cst_30 : f32 to vector<18x1xf32>
    %44 = arith.divf %42, %43 : vector<18x1xf32>
    %cst_31 = arith.constant 9.99999974E-6 : f32
    %45 = vector.broadcast %cst_31 : f32 to vector<18x1xf32>
    %46 = arith.addf %44, %45 : vector<18x1xf32>
    %47 = math.rsqrt %46 : vector<18x1xf32>
    %48 = vector.broadcast %47 : vector<18x1xf32> to vector<18x32xf32>
    %49 = arith.mulf %39, %48 : vector<18x32xf32>
    %50 = vector.broadcast %9 : vector<1x32xf32> to vector<18x32xf32>
    %51 = arith.mulf %49, %50 : vector<18x32xf32>
    %52 = vector.broadcast %10 : vector<1x32xf32> to vector<18x32xf32>
    %53 = arith.addf %51, %52 : vector<18x32xf32>
    %c1_i32 = arith.constant 1 : i32
    %54 = arith.subi %0, %c1_i32 : i32
    %55 = tpu.iota {dimensions = array<i32: 0>} : vector<18x1xi32>
    %56 = vector.broadcast %54 : i32 to vector<18x1xi32>
    %57 = arith.addi %56, %55 : vector<18x1xi32>
    %c0_i32 = arith.constant 0 : i32
    %58 = vector.broadcast %c0_i32 : i32 to vector<18x1xi32>
    %59 = arith.cmpi sge, %57, %58 : vector<18x1xi32>
    %c40_i32 = arith.constant 40 : i32
    %60 = vector.broadcast %c40_i32 : i32 to vector<18x1xi32>
    %61 = arith.cmpi slt, %57, %60 : vector<18x1xi32>
    %62 = arith.andi %59, %61 : vector<18x1xi1>
    %cst_32 = arith.constant 0.000000e+00 : f32
    %63 = vector.shape_cast %62 : vector<18x1xi1> to vector<18x1xi1>
    %64 = vector.broadcast %63 : vector<18x1xi1> to vector<18x32xi1>
    %65 = vector.broadcast %cst_32 : f32 to vector<18x32xf32>
    %66 = arith.select %64, %53, %65 : vector<18x32xi1>, vector<18x32xf32>
    %67 = arith.truncf %66 : vector<18x32xf32> to vector<18x32xbf16>
    %68 = vector.extract_strided_slice %67 {offsets = [0, 0], sizes = [16, 32], strides = [1, 1]} : vector<18x32xbf16> to vector<16x32xbf16>
    %c0_33 = arith.constant 0 : index
    %c0_34 = arith.constant 0 : index
    %c0_35 = arith.constant 0 : index
    %69 = vector.load %arg5[%c0_33, %c0_34, %c0_35] : memref<3x32x32xbf16, #tpu.memory_space<vmem>>, vector<1x32x32xbf16>
    %70 = vector.shape_cast %69 : vector<1x32x32xbf16> to vector<32x32xbf16>
    %cst_36 = arith.constant dense<0.000000e+00> : vector<16x32xf32>
    %71 = tpu.matmul %68, %70, %cst_36 {dimension_numbers = #tpu.dot_dimension_numbers<[1], [0], [0], [1], [0, 0, 1, 1], [], []>} : vector<16x32xbf16>, vector<32x32xbf16>, vector<16x32xf32> -> vector<16x32xf32>
    %72 = vector.extract_strided_slice %67 {offsets = [1, 0], sizes = [16, 32], strides = [1, 1]} : vector<18x32xbf16> to vector<16x32xbf16>
    %c1_37 = arith.constant 1 : index
    %c0_38 = arith.constant 0 : index
    %c0_39 = arith.constant 0 : index
    %73 = vector.load %arg5[%c1_37, %c0_38, %c0_39] : memref<3x32x32xbf16, #tpu.memory_space<vmem>>, vector<1x32x32xbf16>
    %74 = vector.shape_cast %73 : vector<1x32x32xbf16> to vector<32x32xbf16>
    %cst_40 = arith.constant dense<0.000000e+00> : vector<16x32xf32>
    %75 = tpu.matmul %72, %74, %cst_40 {dimension_numbers = #tpu.dot_dimension_numbers<[1], [0], [0], [1], [0, 0, 1, 1], [], []>} : vector<16x32xbf16>, vector<32x32xbf16>, vector<16x32xf32> -> vector<16x32xf32>
    %76 = arith.addf %71, %75 : vector<16x32xf32>
    %77 = vector.extract_strided_slice %67 {offsets = [2, 0], sizes = [16, 32], strides = [1, 1]} : vector<18x32xbf16> to vector<16x32xbf16>
    %c2_41 = arith.constant 2 : index
    %c0_42 = arith.constant 0 : index
    %c0_43 = arith.constant 0 : index
    %78 = vector.load %arg5[%c2_41, %c0_42, %c0_43] : memref<3x32x32xbf16, #tpu.memory_space<vmem>>, vector<1x32x32xbf16>
    %79 = vector.shape_cast %78 : vector<1x32x32xbf16> to vector<32x32xbf16>
    %cst_44 = arith.constant dense<0.000000e+00> : vector<16x32xf32>
    %80 = tpu.matmul %77, %79, %cst_44 {dimension_numbers = #tpu.dot_dimension_numbers<[1], [0], [0], [1], [0, 0, 1, 1], [], []>} : vector<16x32xbf16>, vector<32x32xbf16>, vector<16x32xf32> -> vector<16x32xf32>
    %81 = arith.addf %76, %80 : vector<16x32xf32>
    %82 = vector.broadcast %11 : vector<1x32xf32> to vector<16x32xf32>
    %83 = arith.addf %81, %82 : vector<16x32xf32>
    %cst_45 = arith.constant 0.000000e+00 : f32
    %84 = vector.broadcast %cst_45 : f32 to vector<16x32xf32>
    %85 = arith.maximumf %83, %84 : vector<16x32xf32>
    %cst_46 = arith.constant dense<0.000000e+00> : vector<16xf32>
    %86 = vector.multi_reduction <add>, %85, %cst_46 [1] : vector<16x32xf32> to vector<16xf32>
    %87 = vector.shape_cast %86 : vector<16xf32> to vector<16x1xf32>
    %cst_47 = arith.constant 3.200000e+01 : f32
    %88 = vector.broadcast %cst_47 : f32 to vector<16x1xf32>
    %89 = arith.divf %87, %88 : vector<16x1xf32>
    %90 = vector.broadcast %89 : vector<16x1xf32> to vector<16x32xf32>
    %91 = arith.subf %85, %90 : vector<16x32xf32>
    %92 = arith.mulf %91, %91 : vector<16x32xf32>
    %cst_48 = arith.constant dense<0.000000e+00> : vector<16xf32>
    %93 = vector.multi_reduction <add>, %92, %cst_48 [1] : vector<16x32xf32> to vector<16xf32>
    %94 = vector.shape_cast %93 : vector<16xf32> to vector<16x1xf32>
    %cst_49 = arith.constant 3.200000e+01 : f32
    %95 = vector.broadcast %cst_49 : f32 to vector<16x1xf32>
    %96 = arith.divf %94, %95 : vector<16x1xf32>
    %cst_50 = arith.constant 9.99999974E-6 : f32
    %97 = vector.broadcast %cst_50 : f32 to vector<16x1xf32>
    %98 = arith.addf %96, %97 : vector<16x1xf32>
    %99 = math.rsqrt %98 : vector<16x1xf32>
    %100 = vector.broadcast %99 : vector<16x1xf32> to vector<16x32xf32>
    %101 = arith.mulf %91, %100 : vector<16x32xf32>
    %102 = vector.broadcast %12 : vector<1x32xf32> to vector<16x32xf32>
    %103 = arith.mulf %101, %102 : vector<16x32xf32>
    %104 = vector.broadcast %13 : vector<1x32xf32> to vector<16x32xf32>
    %105 = arith.addf %103, %104 : vector<16x32xf32>
    %cst_51 = arith.constant dense<0.000000e+00> : vector<1x16xf32>
    %106 = tpu.matmul %14, %105, %cst_51 {dimension_numbers = #tpu.dot_dimension_numbers<[1], [1], [0], [0], [0, 0, 1, 0], [], []>} : vector<1x32xf32>, vector<16x32xf32>, vector<1x16xf32> -> vector<1x16xf32>
    %107 = vector.broadcast %15 : vector<1x1xf32> to vector<1x16xf32>
    %108 = arith.addf %106, %107 : vector<1x16xf32>
    %109 = vector.shape_cast %108 : vector<1x16xf32> to vector<1x16xf32>
    %110 = vector.broadcast %109 : vector<1x16xf32> to vector<8x16xf32>
    %c0_52 = arith.constant 0 : index
    %c0_53 = arith.constant 0 : index
    %c0_54 = arith.constant 0 : index
    %c0_55 = arith.constant 0 : index
    %111 = vector.load %arg7[%c0_52, %c0_53, %c0_54, %c0_55] : memref<1x1x8x16xf32, #tpu.memory_space<vmem>>, vector<1x1x8x16xf32>
    %112 = vector.shape_cast %111 : vector<1x1x8x16xf32> to vector<8x16xf32>
    %113 = vector.shape_cast %110 : vector<8x16xf32> to vector<1x1x8x16xf32>
    tpu.vector_store %arg7[%c0_52, %c0_53, %c0_54, %c0_55], %113 {strides = array<i32>} : memref<1x1x8x16xf32, #tpu.memory_space<vmem>>, vector<1x1x8x16xf32>,
    return
  }
  func.func @transform_0(%arg0: i32, %arg1: i32) -> (i32, i32, i32) {
    %c0_i32 = arith.constant 0 : i32
    %c0_i32_0 = arith.constant 0 : i32
    return %arg0, %arg1, %c0_i32 : i32, i32, i32
  }
  func.func @transform_1(%arg0: i32, %arg1: i32) -> (i32, i32, i32, i32) {
    %c0_i32 = arith.constant 0 : i32
    %c0_i32_0 = arith.constant 0 : i32
    %c0_i32_1 = arith.constant 0 : i32
    return %arg0, %arg1, %c0_i32, %c0_i32_0 : i32, i32, i32, i32
  }
  func.func @transform_2(%arg0: i32, %arg1: i32) -> (i32, i32, i32) {
    %c0_i32 = arith.constant 0 : i32
    %c0_i32_0 = arith.constant 0 : i32
    %c0_i32_1 = arith.constant 0 : i32
    %c0_i32_2 = arith.constant 0 : i32
    return %c0_i32, %c0_i32_0, %c0_i32_1 : i32, i32, i32
  }
  func.func @transform_3(%arg0: i32, %arg1: i32) -> (i32, i32, i32) {
    %c0_i32 = arith.constant 0 : i32
    %c0_i32_0 = arith.constant 0 : i32
    %c0_i32_1 = arith.constant 0 : i32
    %c0_i32_2 = arith.constant 0 : i32
    return %c0_i32, %c0_i32_0, %c0_i32_1 : i32, i32, i32
  }
  func.func @transform_4(%arg0: i32, %arg1: i32) -> (i32, i32) {
    %c0_i32 = arith.constant 0 : i32
    %c0_i32_0 = arith.constant 0 : i32
    %c0_i32_1 = arith.constant 0 : i32
    return %c0_i32, %c0_i32_0 : i32, i32
  }
  func.func @transform_5(%arg0: i32, %arg1: i32) -> (i32, i32, i32, i32) {
    %c0_i32 = arith.constant 0 : i32
    %c0_i32_0 = arith.constant 0 : i32
    %c0_i32_1 = arith.constant 0 : i32
    return %arg0, %arg1, %c0_i32, %c0_i32_0 : i32, i32, i32, i32
  }
}

</mosaic_0001>

<llo_original>
// kernel: tpu_custom_call.1
$region0: #{tpu_custom_call.1}
  #allocation0 [shape = 'u32[]', space=smem, size = 0x4, offset = 0x4, fixed_abs, tag = 'smem constant byte address 0x4 - core index']
  #allocation1 [shape = 'u32[72,128]{1,0:T(1,128)}', space=vmem, size = 0x9000, scoped, tag = 'internal scratch']
  %s0 = inlined_call_operand.vmem [shape: bf16[2,48,32], index: 0, kind: input, shape index: {}]
  %s1 = inlined_call_operand.vmem [shape: bf16[2,3,4,32], index: 1, kind: input, shape index: {}]
  %s2 = inlined_call_operand.vmem [shape: bf16[3,32,32], index: 2, kind: input, shape index: {}]
  %s3 = inlined_call_operand.hbm [shape: bf16[3,32,32], index: 3, kind: input, shape index: {}]
  %s4 = inlined_call_operand.vmem [shape: f32[8,32], index: 4, kind: input, shape index: {}]
  %s5 = inlined_call_operand.hbm [shape: f32[2,3,8,16], index: 5, kind: output, shape index: {}]
  %s6 = sld [smem:[#allocation0]]
  $region57: #{tpu_custom_call.1} parent=0
    _
  %s8 = ssub.s32 1, %s6
  %s9 = scalar_select 0, %s8, %s6
  $region1: #{tpu_custom_call.1} parent=0
    #allocation2 [shape = 'u8[24576]{0}', space=vmem, size = 0x6000, scoped, tag = 'input window, operand 3, single buffered']
    #allocation3 [shape = 's32[2]{0}', space=sflag, size = 0x8, scoped, tag = 'scoped memory for tpu_custom_call.1']
    #allocation4 [shape = 's32[2]{0}', space=sflag, size = 0x8, scoped, tag = 'scoped memory for tpu_custom_call.1']
    #allocation5 [shape = 'u8[8192]{0}', space=vmem, size = 0x2000, scoped, tag = 'output window, operand 0']
    %10 = vsyncpa [#allocation3], 0
    %11 = vsyncpa [#allocation4], 0
    %s12 = scalar_lea.sflag [#allocation4], 1
    %13 = vsyncpa %s12, 0
    loop: start=0, step=1, limit=8
    $region2: #{tpu_custom_call.1} parent=1 // loop_pre_header
      _
    $region3: #{tpu_custom_call.1} parent=1 // loop_header
      %s15 = sphi 0, %s19
      %p16 = scmp.ge.s32.totalorder %s15, 8
      %s22 = sphi 0, %s34
      %s23 = sphi 0, %s30
      %s24 = sphi 0, %s22
      %s25 = sphi 0, %s23
      %s26 = sphi 0, %s24
      %s27 = sphi 0, %s25
      %s39 = sphi 0, %s41
      %s42 = sphi 0, %s39
      %s43 = sphi 0, %s42
      %s59 = sphi 0, %s43
      %s67 = sphi 0, %s69
      %s70 = sphi 0, %s67
      %s71 = sphi 0, %s70
      %s87 = sphi 0, %s71
      %s91 = sphi 0, %s91
      %s93 = sphi 0, %s91
      %s94 = sphi 0, %s93
      %s108 = sphi 0, %s94
      %s112 = sphi 0, %s112
      %s114 = sphi 0, %s112
      %s115 = sphi 0, %s114
      %s129 = sphi 0, %s115
      %s133 = sphi 0, %s133
      %s135 = sphi 0, %s133
      %s136 = sphi 0, %s135
      %s150 = sphi 0, %s136
      %s158 = sphi 0, %s160
      %s161 = sphi 0, %s158
      %s162 = sphi 0, %s161
      %s178 = sphi 0, %s162
    $region4: #{tpu_custom_call.1} parent=1 // loop_header_branch
      %18 = sbr.rel (%p16) target = $region8
    $region5: #{tpu_custom_call.1} parent=1 // loop_body
      %s20 = ssub.s32 %s15, 1
      %s21 = ssub.s32 %s15, 2
      %s28 = sadd.s32 1, %s23
      %p29 = scmp.ge.s32.totalorder %s28, 3
      %s30 = scalar_select %p29, 0, %s28
      %s31 = sadd.s32 1, %s22
      %s32 = scalar_select %p29, %s31, %s22
      %p33 = scmp.ge.s32.totalorder %s32, 2
      %s34 = scalar_select %p33, 0, %s32
      %s35 = ssub.s32 %s22, %s34
      %s36 = ssub.s32 %s23, %s30
      %s37 = sor.u32 %s35, %s36
      %p38 = scmp.eq.s32.totalorder %s37, 0
      %s40 = sadd.s32 %s39, 1
      %s41 = scalar_select %p38, %s39, %s40
      %p44 = pneg %p38
      %p45 = scmp.eq.s32.totalorder %s15, 5
      %p46 = por %p44, %p45
      %p47 = scmp.ne.s32.totalorder %s39, %s42
      %p48 = scmp.eq.s32.totalorder %s15, 0
      %p49 = por %p47, %p48
      %p50 = scmp.ne.s32.totalorder %s39, %s42
      %p51 = scmp.eq.s32.totalorder %s20, 5
      %p52 = por %p50, %p51
      %p53 = scmp.ne.s32.totalorder %s42, %s43
      %p54 = scmp.eq.s32.totalorder %s20, 0
      %p55 = por %p53, %p54
      %p56 = scmp.ne.s32.totalorder %s42, %s43
      %p57 = scmp.eq.s32.totalorder %s21, 5
      %p58 = por %p56, %p57
      %p60 = scmp.ne.s32.totalorder %s43, %s59
      %p61 = scmp.eq.s32.totalorder %s21, 0
      %p62 = por %p60, %p61
      %s63 = ssub.s32 %s22, %s34
      %s64 = ssub.s32 %s23, %s30
      %s65 = sor.u32 %s63, %s64
      %p66 = scmp.eq.s32.totalorder %s65, 0
      %s68 = sadd.s32 %s67, 1
      %s69 = scalar_select %p66, %s67, %s68
      %p72 = pneg %p66
      %p73 = scmp.eq.s32.totalorder %s15, 5
      %p74 = por %p72, %p73
      %p75 = scmp.ne.s32.totalorder %s67, %s70
      %p76 = scmp.eq.s32.totalorder %s15, 0
      %p77 = por %p75, %p76
      %p78 = scmp.ne.s32.totalorder %s67, %s70
      %p79 = scmp.eq.s32.totalorder %s20, 5
      %p80 = por %p78, %p79
      %p81 = scmp.ne.s32.totalorder %s70, %s71
      %p82 = scmp.eq.s32.totalorder %s20, 0
      %p83 = por %p81, %p82
      %p84 = scmp.ne.s32.totalorder %s70, %s71
      %p85 = scmp.eq.s32.totalorder %s21, 5
      %p86 = por %p84, %p85
      %p88 = scmp.ne.s32.totalorder %s71, %s87
      %p89 = scmp.eq.s32.totalorder %s21, 0
      %p90 = por %p88, %p89
      %s92 = sadd.s32 %s91, 1
      %p95 = scmp.eq.s32.totalorder %s15, 5
      %p96 = scmp.ne.s32.totalorder %s91, %s93
      %p97 = scmp.eq.s32.totalorder %s15, 0
      %p98 = por %p96, %p97
      %p99 = scmp.ne.s32.totalorder %s91, %s93
      %p100 = scmp.eq.s32.totalorder %s20, 5
      %p101 = por %p99, %p100
      %p102 = scmp.ne.s32.totalorder %s93, %s94
      %p103 = scmp.eq.s32.totalorder %s20, 0
      %p104 = por %p102, %p103
      %p105 = scmp.ne.s32.totalorder %s93, %s94
      %p106 = scmp.eq.s32.totalorder %s21, 5
      %p107 = por %p105, %p106
      %p109 = scmp.ne.s32.totalorder %s94, %s108
      %p110 = scmp.eq.s32.totalorder %s21, 0
      %p111 = por %p109, %p110
      %s113 = sadd.s32 %s112, 1
      %p116 = scmp.eq.s32.totalorder %s15, 5
      %p117 = scmp.ne.s32.totalorder %s112, %s114
      %p118 = scmp.eq.s32.totalorder %s15, 0
      %p119 = por %p117, %p118
      %p120 = scmp.ne.s32.totalorder %s112, %s114
      %p121 = scmp.eq.s32.totalorder %s20, 5
      %p122 = por %p120, %p121
      %p123 = scmp.ne.s32.totalorder %s114, %s115
      %p124 = scmp.eq.s32.totalorder %s20, 0
      %p125 = por %p123, %p124
      %p126 = scmp.ne.s32.totalorder %s114, %s115
      %p127 = scmp.eq.s32.totalorder %s21, 5
      %p128 = por %p126, %p127
      %p130 = scmp.ne.s32.totalorder %s115, %s129
      %p131 = scmp.eq.s32.totalorder %s21, 0
      %p132 = por %p130, %p131
      %s134 = sadd.s32 %s133, 1
      %p137 = scmp.eq.s32.totalorder %s15, 5
      %p138 = scmp.ne.s32.totalorder %s133, %s135
      %p139 = scmp.eq.s32.totalorder %s15, 0
      %p140 = por %p138, %p139
      %p141 = scmp.ne.s32.totalorder %s133, %s135
      %p142 = scmp.eq.s32.totalorder %s20, 5
      %p143 = por %p141, %p142
      %p144 = scmp.ne.s32.totalorder %s135, %s136
      %p145 = scmp.eq.s32.totalorder %s20, 0
      %p146 = por %p144, %p145
      %p147 = scmp.ne.s32.totalorder %s135, %s136
      %p148 = scmp.eq.s32.totalorder %s21, 5
      %p149 = por %p147, %p148
      %p151 = scmp.ne.s32.totalorder %s136, %s150
      %p152 = scmp.eq.s32.totalorder %s21, 0
      %p153 = por %p151, %p152
      %s154 = ssub.s32 %s22, %s34
      %s155 = ssub.s32 %s23, %s30
      %s156 = sor.u32 %s154, %s155
      %p157 = scmp.eq.s32.totalorder %s156, 0
      %s159 = sadd.s32 %s158, 1
      %s160 = scalar_select %p157, %s158, %s159
      %p163 = pneg %p157
      %p164 = scmp.eq.s32.totalorder %s15, 5
      %p165 = por %p163, %p164
      %p166 = scmp.ne.s32.totalorder %s158, %s161
      %p167 = scmp.eq.s32.totalorder %s15, 0
      %p168 = por %p166, %p167
      %p169 = scmp.ne.s32.totalorder %s158, %s161
      %p170 = scmp.eq.s32.totalorder %s20, 5
      %p171 = por %p169, %p170
      %p172 = scmp.ne.s32.totalorder %s161, %s162
      %p173 = scmp.eq.s32.totalorder %s20, 0
      %p174 = por %p172, %p173
      %p175 = scmp.ne.s32.totalorder %s161, %s162
      %p176 = scmp.eq.s32.totalorder %s21, 5
      %p177 = por %p175, %p176
      %p179 = scmp.ne.s32.totalorder %s162, %s178
      %p180 = scmp.eq.s32.totalorder %s21, 0
      %p181 = por %p179, %p180
      %p182 = scmp.le.s32.totalorder 1, %s15
      %p183 = scmp.lt.s32.totalorder %s15, 7
      %p184 = pnand %p182, %p183
      %p185 = pneg %p184
      // Predicated region
      $region9: #{tpu_custom_call.1} parent=5 // pred_check
        _
      $region10: #{tpu_custom_call.1} parent=5 // pred_check_branch
        %187 = sbr.rel (%p184) target = $region12
      $region11: #{tpu_custom_call.1} parent=5 // pred_region
        %s188 = ssub.s32 %s15, 1
        // Predicated region
        $region13: #{tpu_custom_call.1} parent=11 // pred_check
          %p189 = pneg %p104
        $region14: #{tpu_custom_call.1} parent=11 // pred_check_branch
          %191 = sbr.rel (%p189) target = $region16
        $region15: #{tpu_custom_call.1} parent=11 // pred_region
          _
        $region16: #{tpu_custom_call.1} parent=11 // pred_fallthru
          _
        // Predicated region
        $region17: #{tpu_custom_call.1} parent=11 // pred_check
          %p192 = pneg %p125
        $region18: #{tpu_custom_call.1} parent=11 // pred_check_branch
          %194 = sbr.rel (%p192) target = $region20
        $region19: #{tpu_custom_call.1} parent=11 // pred_region
          %196 = vsyncadd [#allocation3], 0
          %s197 = sshll.u32 %s3, 4
          %s198 = int_to_ptr.hbm [resolvable:$true] %s197
          %s199 = sshll.u32 [#allocation2], 4
          %s200 = int_to_ptr.vmem [resolvable:$true] %s199
          %205 = dma.hbm_to_vmem [thread:$0]  %s198, 768, %s200, [#allocation3], 64, 64, 4
        $region20: #{tpu_custom_call.1} parent=11 // pred_fallthru
          _
        // Predicated region
        $region21: #{tpu_custom_call.1} parent=11 // pred_check
          %p206 = pneg %p146
        $region22: #{tpu_custom_call.1} parent=11 // pred_check_branch
          %208 = sbr.rel (%p206) target = $region24
        $region23: #{tpu_custom_call.1} parent=11 // pred_region
          _
        $region24: #{tpu_custom_call.1} parent=11 // pred_fallthru
          _
      $region12: #{tpu_custom_call.1} parent=5 // pred_fallthru
        _
      %p209 = scmp.lt.s32.totalorder %s15, 6
      // Predicated region
      $region25: #{tpu_custom_call.1} parent=5 // pred_check
        %p210 = pneg %p209
      $region26: #{tpu_custom_call.1} parent=5 // pred_check_branch
        %212 = sbr.rel (%p210) target = $region28
      $region27: #{tpu_custom_call.1} parent=5 // pred_region
        // Predicated region
        $region29: #{tpu_custom_call.1} parent=27 // pred_check
          %p213 = pneg %p49
        $region30: #{tpu_custom_call.1} parent=27 // pred_check_branch
          %215 = sbr.rel (%p213) target = $region32
        $region31: #{tpu_custom_call.1} parent=27 // pred_region
          %s216 = smul.u32 2, %s23
          %p217 = scmp.lt.s32.totalorder %s22, 1
          %s218 = scalar_select %p217, %s22, 1
          %p219 = scmp.lt.s32.totalorder %s216, 5
          %s220 = scalar_select %p219, %s216, 5
          %s221 = smul.addr %s218, 6
          %s222 = sadd.s32 %s220, %s221
          %s223 = smul.addr %s222, 4
          %s224 = scalar_lea.vmem %s0, %s223
          %s225 = smul.u32 2, %s23
        $region32: #{tpu_custom_call.1} parent=27 // pred_fallthru
          _
        // Predicated region
        $region33: #{tpu_custom_call.1} parent=27 // pred_check
          %p226 = pneg %p77
        $region34: #{tpu_custom_call.1} parent=27 // pred_check_branch
          %228 = sbr.rel (%p226) target = $region36
        $region35: #{tpu_custom_call.1} parent=27 // pred_region
          %p229 = scmp.lt.s32.totalorder %s22, 1
          %s230 = scalar_select %p229, %s22, 1
          %p231 = scmp.lt.s32.totalorder %s23, 2
          %s232 = scalar_select %p231, %s23, 2
          %s233 = smul.addr %s230, 3
          %s234 = sadd.s32 %s232, %s233
          %s235 = smul.addr %s234, 2
          %s236 = scalar_lea.vmem %s1, %s235
        $region36: #{tpu_custom_call.1} parent=27 // pred_fallthru
          _
      $region28: #{tpu_custom_call.1} parent=5 // pred_fallthru
        _
      %p237 = scmp.le.s32.totalorder 1, %s15
      %p238 = scmp.lt.s32.totalorder %s15, 7
      %p239 = pnand %p237, %p238
      %p240 = pneg %p239
      // Predicated region
      $region37: #{tpu_custom_call.1} parent=5 // pred_check
        _
      $region38: #{tpu_custom_call.1} parent=5 // pred_check_branch
        %242 = sbr.rel (%p239) target = $region40
      $region39: #{tpu_custom_call.1} parent=5 // pred_region
        %s243 = ssub.s32 %s15, 1
        // Predicated region
        $region41: #{tpu_custom_call.1} parent=39 // pred_check
          %p244 = pneg %p125
        $region42: #{tpu_custom_call.1} parent=39 // pred_check_branch
          %246 = sbr.rel (%p244) target = $region44
        $region43: #{tpu_custom_call.1} parent=39 // pred_region
          %248 = dma.done [#allocation3], 768
        $region44: #{tpu_custom_call.1} parent=39 // pred_fallthru
          _
        %s249 = smul.u32 2, %s25
        %p250 = scmp.lt.s32.totalorder %s24, 1
        %s251 = scalar_select %p250, %s24, 1
        %p252 = scmp.lt.s32.totalorder %s249, 5
        %s253 = scalar_select %p252, %s249, 5
        %s254 = smul.addr %s251, 6
        %s255 = sadd.s32 %s253, %s254
        %s256 = smul.addr %s255, 4
        %s257 = scalar_lea.vmem %s0, %s256
        %p258 = pneg %p55
        %p259 = pneg %p52
        %p260 = scmp.lt.s32.totalorder %s24, 1
        %s261 = scalar_select %p260, %s24, 1
        %p262 = scmp.lt.s32.totalorder %s25, 2
        %s263 = scalar_select %p262, %s25, 2
        %s264 = smul.addr %s261, 3
        %s265 = sadd.s32 %s263, %s264
        %s266 = smul.addr %s265, 2
        %s267 = scalar_lea.vmem %s1, %s266
        %p268 = pneg %p83
        %p269 = pneg %p80
        %p270 = pneg %p104
        %p271 = pneg %p101
        %p272 = pneg %p125
        %p273 = pneg %p122
        %p274 = pneg %p146
        %p275 = pneg %p143
        %p276 = pneg %p174
        %p277 = pneg %p171
        %s278 = sand.u32 %s161, 1
        %s279 = scalar_lea.sflag [#allocation4], %s278
        %s280 = sand.u32 %s161, 1
        %s281 = smul.addr %s280, 8
        %s282 = scalar_lea.vmem [#allocation5], %s281
        %s283 = smul.u32 2, %s25
        %p284 = scmp.lt.s32.totalorder %s24, 1
        %s285 = scalar_select %p284, %s24, 1
        %p286 = scmp.lt.s32.totalorder %s283, 5
        %s287 = scalar_select %p286, %s283, 5
        %s288 = smul.addr %s285, 6
        %s289 = sadd.s32 %s287, %s288
        %s290 = smul.addr %s289, 4
        %s291 = scalar_lea.vmem %s0, %s290
        %s292 = smul.u32 2, %s25
        %p293 = scmp.lt.s32.totalorder %s24, 1
        %s294 = scalar_select %p293, %s24, 1
        %p295 = scmp.lt.s32.totalorder %s25, 2
        %s296 = scalar_select %p295, %s25, 2
        %s297 = smul.addr %s294, 3
        %s298 = sadd.s32 %s296, %s297
        %s299 = smul.addr %s298, 2
        %s300 = scalar_lea.vmem %s1, %s299
        %s302 = smul.u32 %s25, 16
        %v303 = vld [vmem:[%s291] sm:$0xf]
        %v304 = vld [vmem:[%s291 + $0x4] sm:$0xf]
        %v305 = vld [vmem:[%s300] sm:$0x3]
        %v308 = vunpack.c.l.b16 %v303
        %v309 = vunpack.c.l.b16 %v304
        %v310 = vpack.c.b16 %v309, %v308
        %v311 = vrot.slane %v310, 7
        %vm312 = vcmask 1040384
        %v315 = vsel %vm312, %v305, %v311
        %v316 = vsel %vm312, %v311, %v305
        %v317 = vld [vmem:[%s4] sm:$0x1]
        %v318 = vld [vmem:[%s4 + $0x1] sm:$0x1]
        %v319 = vld [vmem:[%s4 + $0x2] sm:$0x1]
        %v320 = vld [vmem:[%s4 + $0x3] sm:$0x1]
        %v321 = vld [vmem:[%s4 + $0x4] sm:$0x1]
        %v322 = vld [vmem:[%s4 + $0x5] sm:$0x1]
        %v323 = vld [vmem:[%s4 + $0x6] sm:$0x1]
        %v324 = vld [vmem:[%s4 + $0x7] sm:$0x1]
        %v325 = vld [vmem:[%s2] sm:$0xf]
        %v326 = vld [vmem:[%s2 + $0x4] sm:$0xf]
        %v327 = vld [vmem:[%s2 + $0x8] sm:$0xf]
        %v328 = vld [vmem:[%s2 + $0xc] sm:$0xf]
        %s329 = scalar_lea.vmem %s2, 16
        %v330 = vld [vmem:[%s329] sm:$0xf]
        %v331 = vld [vmem:[%s329 + $0x4] sm:$0xf]
        %v332 = vld [vmem:[%s329 + $0x8] sm:$0xf]
        %v333 = vld [vmem:[%s329 + $0xc] sm:$0xf]
        %vm334 = vsmask.f32 7424
        %v335 = vshrl.u32 %v315, 16
        %v337 = vshll.u32 %v315, 16
        %v339 = vrot.slane %v337, 1
        %v340 = vor.u32 %v335, %v339
        %v341 = vshll.u32 %v316, 16
        %v343 = vrot.slane %v341, 1
        %v344 = vsel %vm334, %v340, %v343
        %v345 = vshrl.u32 %v316, 16
        %v347 = vor.u32 %v345, %v343
        %v352 = vunpack.c.l.b16 %v330
        %v353 = vunpack.c.l.b16 %v331
        %v354 = vunpack.c.l.b16 %v332
        %v355 = vunpack.c.l.b16 %v333
        %v356 = vpack.c.b16 %v353, %v352
        %v357 = vpack.c.b16 %v355, %v354
        %vm360 = vcmask 261120
        %v362 = vsel %vm360, %v344, 0
        %v365 = vsel %vm360, %v347, 0
        %367 = vmatpush.bf16.msra.mxu0 0
        %368 = vmatpush.bf16.msra.mxu0 0
        %369 = vmatpush.bf16.msra.mxu0 0
        %370 = vmatpush.bf16.msra.mxu0 0
        %371 = vmatpush.bf16.msra.mxu0 0
        %372 = vmatpush.bf16.msra.mxu0 0
        %373 = vmatpush.bf16.msra.mxu0 %v357
        %374 = vmatpush.bf16.msra.mxu0 %v356
        %375 = vmatmul.bf16.gmra.mxu0 %v362
        %v376 = vpop.f32.mrf.mxu0
        %v377 = vadd.f32 0.0, %v376
        %v378 = vpop.f32.mrf.mxu0
        %v379 = vadd.f32 0.0, %v378
        %380 = vmatmul.bf16.gmra.mxu0 %v365
        %v381 = vpop.f32.mrf.mxu0
        %v382 = vadd.f32 0.0, %v381
        %v383 = vpop.f32.mrf.mxu0
        %384 = vdwg.mxu0
        %v389 = vunpack.c.l.b16 %v325
        %v390 = vunpack.c.l.b16 %v326
        %v391 = vunpack.c.l.b16 %v327
        %v392 = vunpack.c.l.b16 %v328
        %v393 = vpack.c.b16 %v390, %v389
        %v394 = vpack.c.b16 %v392, %v391
        %v397 = vsel %vm360, %v315, 0
        %v399 = vsel %vm360, %v316, 0
        %401 = vmatpush.bf16.msra.mxu0 0
        %402 = vmatpush.bf16.msra.mxu0 0
        %403 = vmatpush.bf16.msra.mxu0 0
        %404 = vmatpush.bf16.msra.mxu0 0
        %405 = vmatpush.bf16.msra.mxu0 0
        %406 = vmatpush.bf16.msra.mxu0 0
        %407 = vmatpush.bf16.msra.mxu0 %v394
        %408 = vmatpush.bf16.msra.mxu0 %v393
        %409 = vmatmul.bf16.gmra.mxu0 %v397
        %v410 = vpop.f32.mrf.mxu0
        %v411 = vadd.f32 %v377, %v410
        %v412 = vpop.f32.mrf.mxu0
        %v413 = vadd.f32 %v379, %v412
        %414 = vmatmul.bf16.gmra.mxu0 %v399
        %v415 = vpop.f32.mrf.mxu0
        %v416 = vadd.f32 %v382, %v415
        %v417 = vpop.f32.mrf.mxu0
        %418 = vdwg.mxu0
        %s419 = scalar_lea.vmem %s2, 32
        %v420 = vld [vmem:[%s419] sm:$0xf]
        %v421 = vld [vmem:[%s419 + $0x4] sm:$0xf]
        %v422 = vld [vmem:[%s419 + $0x8] sm:$0xf]
        %v423 = vld [vmem:[%s419 + $0xc] sm:$0xf]
        %vm426 = vcmask 1046528
        %v427 = vrot.slane %v315, 1
        %v428 = vrot.slane %v316, 1
        %v429 = vsel %vm426, %v427, %v428
        %v434 = vunpack.c.l.b16 %v420
        %v435 = vunpack.c.l.b16 %v421
        %v436 = vunpack.c.l.b16 %v422
        %v437 = vunpack.c.l.b16 %v423
        %v438 = vpack.c.b16 %v435, %v434
        %v439 = vpack.c.b16 %v437, %v436
        %v443 = vsel %vm360, %v429, 0
        %v446 = vsel %vm360, %v428, 0
        %448 = vmatpush.bf16.msra.mxu0 0
        %449 = vmatpush.bf16.msra.mxu0 0
        %450 = vmatpush.bf16.msra.mxu0 0
        %451 = vmatpush.bf16.msra.mxu0 0
        %452 = vmatpush.bf16.msra.mxu0 0
        %453 = vmatpush.bf16.msra.mxu0 0
        %454 = vmatpush.bf16.msra.mxu0 %v439
        %455 = vmatpush.bf16.msra.mxu0 %v438
        %456 = vmatmul.bf16.gmra.mxu0 %v443
        %v457 = vpop.f32.mrf.mxu0
        %v458 = vadd.f32 0.0, %v457
        %v459 = vpop.f32.mrf.mxu0
        %v460 = vadd.f32 0.0, %v459
        %461 = vmatmul.bf16.gmra.mxu0 %v446
        %v462 = vpop.f32.mrf.mxu0
        %v463 = vadd.f32 0.0, %v462
        %v464 = vpop.f32.mrf.mxu0
        %465 = vdwg.mxu0
        %v466 = vadd.f32 %v411, %v458
        %v467 = vadd.f32 %v413, %v460
        %v468 = vadd.f32 %v416, %v463
        %v469 = vperm.slane %v317, 0
        %v470 = vadd.f32 %v466, %v469
        %v471 = vadd.f32 %v467, %v469
        %v472 = vadd.f32 %v468, %v469
        %v473 = vmax.f32 %v470, 0.0
        %v474 = vmax.f32 %v471, 0.0
        %v475 = vmax.f32 %v472, 0.0
        %v476 = vsel %vm360, %v473, 0.0
        %477 = vadd.xlane.f32.xlu0 %v476
        %v478 = vpop.xlane.xlu0 %477
        %v479 = vsel %vm360, %v474, 0.0
        %480 = vadd.xlane.f32.xlu0 %v479
        %v481 = vpop.xlane.xlu0 %480
        %vm482 = vcmask 254976
        %v483 = vsel %vm482, %v475, 0.0
        %484 = vadd.xlane.f32.xlu0 %v483
        %v485 = vpop.xlane.xlu0 %484
        %v486 = vrcp.pop 32.0
        %v487 = vmul.f32 32.0, %v486
        %v488 = vsub.f32 1.0, %v487
        %v489 = vmul.f32 %v486, %v488
        %v490 = vadd.f32 %v486, %v489
        %vm491 = vweird.f32 %v486
        %v492 = vsel %vm491, %v486, %v490
        %v493 = vmul.f32 %v478, %v492
        %v494 = vmul.f32 %v481, %v492
        %v495 = vmul.f32 %v485, %v492
        %v496 = vsub.f32 %v473, %v493
        %v497 = vsub.f32 %v474, %v494
        %v498 = vsub.f32 %v475, %v495
        %v499 = vmul.f32 %v496, %v496
        %v500 = vmul.f32 %v497, %v497
        %v501 = vmul.f32 %v498, %v498
        %v502 = vsel %vm360, %v499, 0.0
        %503 = vadd.xlane.f32.xlu0 %v502
        %v504 = vpop.xlane.xlu0 %503
        %v505 = vsel %vm360, %v500, 0.0
        %506 = vadd.xlane.f32.xlu0 %v505
        %v507 = vpop.xlane.xlu0 %506
        %v508 = vsel %vm482, %v501, 0.0
        %509 = vadd.xlane.f32.xlu0 %v508
        %v510 = vpop.xlane.xlu0 %509
        %v511 = vmul.f32 %v504, %v492
        %v512 = vmul.f32 %v507, %v492
        %v513 = vmul.f32 %v510, %v492
        %v514 = vadd.f32 %v511, 1e-05
        %v515 = vadd.f32 %v512, 1e-05
        %v516 = vadd.f32 %v513, 1e-05
        %v517 = vrsqrt.pop %v514
        %v518 = vmul.f32 %v517, %v514
        %v519 = vmul.f32 %v518, %v517
        %v520 = vmul.f32 0.5, %v519
        %v521 = vsub.f32 1.5, %v520
        %v522 = vmul.f32 %v517, %v521
        %vm523 = vweird.f32 %v514
        %vm524 = vweird.f32 %v517
        %vm525 = vmor %vm523, %vm524
        %v526 = vsel %vm525, %v517, %v522
        %v527 = vrsqrt.pop %v515
        %v528 = vmul.f32 %v527, %v515
        %v529 = vmul.f32 %v528, %v527
        %v530 = vmul.f32 0.5, %v529
        %v531 = vsub.f32 1.5, %v530
        %v532 = vmul.f32 %v527, %v531
        %vm533 = vweird.f32 %v515
        %vm534 = vweird.f32 %v527
        %vm535 = vmor %vm533, %vm534
        %v536 = vsel %vm535, %v527, %v532
        %v537 = vrsqrt.pop %v516
        %v538 = vmul.f32 %v537, %v516
        %v539 = vmul.f32 %v538, %v537
        %v540 = vmul.f32 0.5, %v539
        %v541 = vsub.f32 1.5, %v540
        %v542 = vmul.f32 %v537, %v541
        %vm543 = vweird.f32 %v516
        %vm544 = vweird.f32 %v537
        %vm545 = vmor %vm543, %vm544
        %v546 = vsel %vm545, %v537, %v542
        %v547 = vmul.f32 %v496, %v526
        %v548 = vmul.f32 %v497, %v536
        %v549 = vmul.f32 %v498, %v546
        %v550 = vperm.slane %v318, 0
        %v551 = vmul.f32 %v547, %v550
        %v552 = vmul.f32 %v548, %v550
        %v553 = vmul.f32 %v549, %v550
        %v554 = vperm.slane %v319, 0
        %v555 = vadd.f32 %v551, %v554
        %v556 = vadd.f32 %v552, %v554
        %v557 = vadd.f32 %v553, %v554
        %s558 = ssub.s32 %s302, 1
        %v559 = vlaneseq
        %v560 = vshrl.u32 %v559, 7
        %v561 = vadd.s32 %v560, 8
        %v562 = vadd.s32 %v560, 16
        %v563 = vstv %s558
        %v564 = vadd.s32 %v563, %v560
        %v565 = vadd.s32 %v563, %v561
        %v566 = vadd.s32 %v563, %v562
        %vm567 = vcmp.ge.s32.totalorder %v564, 0
        %vm568 = vcmp.ge.s32.totalorder %v565, 0
        %vm569 = vcmp.ge.s32.totalorder %v566, 0
        %vm570 = vcmp.lt.s32.totalorder %v564, 40
        %vm571 = vcmp.lt.s32.totalorder %v565, 40
        %vm572 = vcmp.lt.s32.totalorder %v566, 40
        %vm573 = vmand %vm567, %vm570
        %vm574 = vmand %vm568, %vm571
        %vm575 = vmand %vm569, %vm572
        %v576 = vsel %vm573, 1, 0
        %v577 = vsel %vm574, 1, 0
        %v578 = vsel %vm575, 1, 0
        %vm579 = vcmp.eq.s32.totalorder %v576, 1
        %vm580 = vcmp.eq.s32.totalorder %v577, 1
        %vm581 = vcmp.eq.s32.totalorder %v578, 1
        %v582 = vsel %vm579, %v555, 0.0
        %v583 = vsel %vm580, %v556, 0.0
        %v584 = vsel %vm581, %v557, 0.0
        %v585 = vpack.c.bf16 %v582, %v582
        %v586 = vpack.c.bf16 %v583, %v583
        %v587 = vpack.c.bf16 %v584, %v584
        %v588 = vld [vmem:[#allocation2] sm:$0xf]
        %v589 = vld [vmem:[#allocation2 + $0x4] sm:$0xf]
        %v590 = vld [vmem:[#allocation2 + $0x8] sm:$0xf]
        %v591 = vld [vmem:[#allocation2 + $0xc] sm:$0xf]
        %s592 = scalar_lea.vmem [#allocation2], 16
        %v593 = vld [vmem:[%s592] sm:$0xf]
        %v594 = vld [vmem:[%s592 + $0x4] sm:$0xf]
        %v595 = vld [vmem:[%s592 + $0x8] sm:$0xf]
        %v596 = vld [vmem:[%s592 + $0xc] sm:$0xf]
        %v600 = vunpack.c.l.b16 %v585
        %v601 = vunpack.c.l.b16 %v586
        %v602 = vunpack.c.l.b16 %v587
        %v603 = vpack.c.b16 %v601, %v600
        %v604 = vpack.c.b16 %v602, %v602
        %v606 = vshrl.u32 %v603, 16
        %v608 = vshll.u32 %v603, 16
        %v610 = vrot.slane %v608, 1
        %v611 = vor.u32 %v606, %v610
        %v613 = vshll.u32 %v604, 16
        %v615 = vrot.slane %v613, 1
        %v616 = vsel %vm334, %v611, %v615
        %v621 = vunpack.c.l.b16 %v593
        %v622 = vunpack.c.l.b16 %v594
        %v623 = vunpack.c.l.b16 %v595
        %v624 = vunpack.c.l.b16 %v596
        %v625 = vpack.c.b16 %v622, %v621
        %v626 = vpack.c.b16 %v624, %v623
        %v630 = vsel %vm360, %v616, 0
        %632 = vmatpush.bf16.msra.mxu0 0
        %633 = vmatpush.bf16.msra.mxu0 0
        %634 = vmatpush.bf16.msra.mxu0 0
        %635 = vmatpush.bf16.msra.mxu0 0
        %636 = vmatpush.bf16.msra.mxu0 0
        %637 = vmatpush.bf16.msra.mxu0 0
        %638 = vmatpush.bf16.msra.mxu0 %v626
        %639 = vmatpush.bf16.msra.mxu0 %v625
        %640 = vmatmul.bf16.gmra.mxu0 %v630
        %v641 = vpop.f32.mrf.mxu0
        %v642 = vadd.f32 0.0, %v641
        %v643 = vpop.f32.mrf.mxu0
        %v644 = vadd.f32 0.0, %v643
        %645 = vdwg.mxu0
        %v650 = vunpack.c.l.b16 %v588
        %v651 = vunpack.c.l.b16 %v589
        %v652 = vunpack.c.l.b16 %v590
        %v653 = vunpack.c.l.b16 %v591
        %v654 = vpack.c.b16 %v651, %v650
        %v655 = vpack.c.b16 %v653, %v652
        %v658 = vsel %vm360, %v603, 0
        %660 = vmatpush.bf16.msra.mxu0 0
        %661 = vmatpush.bf16.msra.mxu0 0
        %662 = vmatpush.bf16.msra.mxu0 0
        %663 = vmatpush.bf16.msra.mxu0 0
        %664 = vmatpush.bf16.msra.mxu0 0
        %665 = vmatpush.bf16.msra.mxu0 0
        %666 = vmatpush.bf16.msra.mxu0 %v655
        %667 = vmatpush.bf16.msra.mxu0 %v654
        %668 = vmatmul.bf16.gmra.mxu0 %v658
        %v669 = vpop.f32.mrf.mxu0
        %v670 = vadd.f32 %v642, %v669
        %v671 = vpop.f32.mrf.mxu0
        %v672 = vadd.f32 %v644, %v671
        %673 = vdwg.mxu0
        %s674 = scalar_lea.vmem [#allocation2], 32
        %v675 = vld [vmem:[%s674] sm:$0xf]
        %v676 = vld [vmem:[%s674 + $0x4] sm:$0xf]
        %v677 = vld [vmem:[%s674 + $0x8] sm:$0xf]
        %v678 = vld [vmem:[%s674 + $0xc] sm:$0xf]
        %v679 = vrot.slane %v603, 1
        %v680 = vrot.slane %v604, 1
        %v681 = vsel %vm426, %v679, %v680
        %v686 = vunpack.c.l.b16 %v675
        %v687 = vunpack.c.l.b16 %v676
        %v688 = vunpack.c.l.b16 %v677
        %v689 = vunpack.c.l.b16 %v678
        %v690 = vpack.c.b16 %v687, %v686
        %v691 = vpack.c.b16 %v689, %v688
        %v695 = vsel %vm360, %v681, 0
        %697 = vmatpush.bf16.msra.mxu0 0
        %698 = vmatpush.bf16.msra.mxu0 0
        %699 = vmatpush.bf16.msra.mxu0 0
        %700 = vmatpush.bf16.msra.mxu0 0
        %701 = vmatpush.bf16.msra.mxu0 0
        %702 = vmatpush.bf16.msra.mxu0 0
        %703 = vmatpush.bf16.msra.mxu0 %v691
        %704 = vmatpush.bf16.msra.mxu0 %v690
        %705 = vmatmul.bf16.gmra.mxu0 %v695
        %v706 = vpop.f32.mrf.mxu0
        %v707 = vadd.f32 0.0, %v706
        %v708 = vpop.f32.mrf.mxu0
        %v709 = vadd.f32 0.0, %v708
        %710 = vdwg.mxu0
        %v711 = vadd.f32 %v670, %v707
        %v712 = vadd.f32 %v672, %v709
        %v713 = vperm.slane %v320, 0
        %v714 = vadd.f32 %v711, %v713
        %v715 = vadd.f32 %v712, %v713
        %v716 = vmax.f32 %v714, 0.0
        %v717 = vmax.f32 %v715, 0.0
        %v718 = vsel %vm360, %v716, 0.0
        %719 = vadd.xlane.f32.xlu0 %v718
        %v720 = vpop.xlane.xlu0 %719
        %v721 = vsel %vm360, %v717, 0.0
        %722 = vadd.xlane.f32.xlu0 %v721
        %v723 = vpop.xlane.xlu0 %722
        %v724 = vmul.f32 %v720, %v492
        %v725 = vmul.f32 %v723, %v492
        %v726 = vsub.f32 %v716, %v724
        %v727 = vsub.f32 %v717, %v725
        %v728 = vmul.f32 %v726, %v726
        %v729 = vmul.f32 %v727, %v727
        %v730 = vsel %vm360, %v728, 0.0
        %731 = vadd.xlane.f32.xlu0 %v730
        %v732 = vpop.xlane.xlu0 %731
        %v733 = vsel %vm360, %v729, 0.0
        %734 = vadd.xlane.f32.xlu0 %v733
        %v735 = vpop.xlane.xlu0 %734
        %v736 = vmul.f32 %v732, %v492
        %v737 = vmul.f32 %v735, %v492
        %v738 = vadd.f32 %v736, 1e-05
        %v739 = vadd.f32 %v737, 1e-05
        %v740 = vrsqrt.pop %v738
        %v741 = vmul.f32 %v740, %v738
        %v742 = vmul.f32 %v741, %v740
        %v743 = vmul.f32 0.5, %v742
        %v744 = vsub.f32 1.5, %v743
        %v745 = vmul.f32 %v740, %v744
        %vm746 = vweird.f32 %v738
        %vm747 = vweird.f32 %v740
        %vm748 = vmor %vm746, %vm747
        %v749 = vsel %vm748, %v740, %v745
        %v750 = vrsqrt.pop %v739
        %v751 = vmul.f32 %v750, %v739
        %v752 = vmul.f32 %v751, %v750
        %v753 = vmul.f32 0.5, %v752
        %v754 = vsub.f32 1.5, %v753
        %v755 = vmul.f32 %v750, %v754
        %vm756 = vweird.f32 %v739
        %vm757 = vweird.f32 %v750
        %vm758 = vmor %vm756, %vm757
        %v759 = vsel %vm758, %v750, %v755
        %v760 = vmul.f32 %v726, %v749
        %v761 = vmul.f32 %v727, %v759
        %v762 = vperm.slane %v321, 0
        %v763 = vmul.f32 %v760, %v762
        %v764 = vmul.f32 %v761, %v762
        %v765 = vperm.slane %v322, 0
        %v766 = vadd.f32 %v763, %v765
        %v767 = vadd.f32 %v764, %v765
        %769 = vset.pattern.permute.xlu0 0
        %770 = vperm.xlu0 %769, %v324
        %v771 = vpop.permute.xlu0 %770
        %v774 = vsel %vm360, %v323, 0
        %v777 = vsel %vm360, %v766, 0
        %v780 = vsel %vm360, %v767, 0
        %782 = vmatpush.xpose.msra.mxu0 0.0
        %783 = vmatpush.xpose.msra.mxu0 0.0
        %784 = vmatpush.xpose.msra.mxu0 0.0
        %785 = vmatpush.xpose.msra.mxu0 0.0
        %786 = vmatpush.xpose.msra.mxu0 0.0
        %787 = vmatpush.xpose.msra.mxu0 0.0
        %788 = vmatpush.xpose.msra.mxu0 0.0
        %789 = vmatpush.xpose.msra.mxu0 0.0
        %790 = vmatpush.xpose.msra.mxu0 0.0
        %791 = vmatpush.xpose.msra.mxu0 0.0
        %792 = vmatpush.xpose.msra.mxu0 0.0
        %793 = vmatpush.xpose.msra.mxu0 0.0
        %794 = vmatpush.xpose.msra.mxu0 0.0
        %795 = vmatpush.xpose.msra.mxu0 0.0
        %796 = vmatpush.xpose.msra.mxu0 %v780
        %797 = vmatpush.xpose.msra.mxu0 %v777
        %798 = vmatmul.f32.gmra.mxu0 %v774
        %v799 = vpop.f32.mrf.mxu0
        %v800 = vadd.f32 %v771, %v799
        %801 = vdwg.mxu0
        %v802 = vperm.slane %v800, 0
        %vm803 = vcmask 130048
        %804 = vst.msk [vmem:[%s282] sm:$0xff] %vm803, %v802
        %s805 = sand.u32 %s161, 1
        %s806 = scalar_lea.sflag [#allocation4], %s805
        %s807 = sand.u32 %s161, 1
        %s808 = smul.addr %s807, 8
        %s809 = scalar_lea.vmem [#allocation5], %s808
        // Predicated region
        $region45: #{tpu_custom_call.1} parent=39 // pred_check
          %p810 = pneg %p171
        $region46: #{tpu_custom_call.1} parent=39 // pred_check_branch
          %812 = sbr.rel (%p810) target = $region48
        $region47: #{tpu_custom_call.1} parent=39 // pred_region
          %814 = vsyncadd %s806, 0
          %s815 = smul.addr %s24, 3
          %s816 = sadd.s32 %s25, %s815
          %s817 = smul.addr %s816, 8
          %s818 = scalar_lea.hbm %s5, %s817
          %s820 = sshll.u32 %s809, 4
          %s821 = int_to_ptr.vmem [resolvable:$true] %s820
          %s822 = sshll.u32 %s818, 4
          %s823 = int_to_ptr.hbm [resolvable:$true] %s822
          %825 = dma.vmem_to_hbm [thread:$0]  %s821, 128, %s823, %s806
        $region48: #{tpu_custom_call.1} parent=39 // pred_fallthru
          _
      $region40: #{tpu_custom_call.1} parent=5 // pred_fallthru
        _
      %p826 = scmp.le.s32.totalorder 2, %s15
      // Predicated region
      $region49: #{tpu_custom_call.1} parent=5 // pred_check
        %p827 = pneg %p826
      $region50: #{tpu_custom_call.1} parent=5 // pred_check_branch
        %829 = sbr.rel (%p827) target = $region52
      $region51: #{tpu_custom_call.1} parent=5 // pred_region
        %s830 = ssub.s32 %s15, 2
        // Predicated region
        $region53: #{tpu_custom_call.1} parent=51 // pred_check
          %p831 = pneg %p177
        $region54: #{tpu_custom_call.1} parent=51 // pred_check_branch
          %833 = sbr.rel (%p831) target = $region56
        $region55: #{tpu_custom_call.1} parent=51 // pred_region
          %s834 = sand.u32 %s162, 1
          %s835 = scalar_lea.sflag [#allocation4], %s834
          %s836 = sand.u32 %s162, 1
          %s837 = smul.addr %s836, 8
          %s838 = scalar_lea.vmem [#allocation5], %s837
          %840 = dma.done %s835, 128
        $region56: #{tpu_custom_call.1} parent=51 // pred_fallthru
          _
      $region52: #{tpu_custom_call.1} parent=5 // pred_fallthru
        _
    $region6: #{tpu_custom_call.1} parent=1 // loop_footer
      %s19 = sadd.s32 1, %s15
    $region7: #{tpu_custom_call.1} parent=1 // loop_footer_branch
      %14 = sbr.rel target = $region3
    $region8: #{tpu_custom_call.1} parent=1 // loop_exit
      _
    %841 = vsyncpa [#allocation3], 1
    %s842 = scalar_lea.sflag [#allocation3], 1
    %843 = vsyncpa %s842, 1
    %844 = vsyncpa [#allocation4], 1
    %s845 = scalar_lea.sflag [#allocation4], 1
    %846 = vsyncpa %s845, 1

</llo_original>
